<compile_context>
chip_gen: v5e
topology: v5e:2x2
jax: 0.10.0
libtpu: 0.0.40
codegen_flags: <defaults>
</compile_context>

<pallas_src>
import math
from functools import partial

import jax
import jax.numpy as jnp
from jax import lax
from jax.experimental import pallas as pl
from jax.experimental.pallas import tpu as pltpu

_LANES = 128
_TILE_BYTES = 2 * 1024 * 1024  # per-block target (2 in-bufs + 2 out-bufs + scratch ~ 10 MiB)


def _pick_tile_rows(n_rows, max_rows):
    """Largest divisor of n_rows <= max_rows, preferring sublane-aligned tiles."""
    cap = max(1, min(n_rows, max_rows))
    fallback = None
    for t in range(cap, 0, -1):
        if n_rows % t:
            continue
        if fallback is None:
            fallback = t
        if t == n_rows or t % 8 == 0:
            return t
    return fallback or 1


def _pe_dropout_kernel(seed_ref, x_ref, o_ref, pe_ref, *,
                       d_model, rows_per_tile, row_width, positions_per_row,
                       dropout_p, apply_dropout):
    TR, W = rows_per_tile, row_width
    rt = pl.program_id(0)   # sequence/row-tile index  ("parallel")
    b = pl.program_id(1)    # batch index              ("arbitrary", innermost)

    # ---- Build the sinusoidal PE tile once per row tile; reuse for all b ----
    @pl.when(b == 0)
    def _build_pe():
        row = rt * TR + lax.broadcasted_iota(jnp.int32, (TR, 1), 0)     # (TR, 1)
        lane = lax.broadcasted_iota(jnp.int32, (1, W), 1)               # (1, W)
        if positions_per_row == 1:
            j = lane                                                    # feature index
            pos = row.astype(jnp.float32)                               # sequence position
        else:
            # Flattened layout: each 128-lane row packs `positions_per_row`
            # consecutive positions; d_model is a power of two here, so use
            # shift/mask instead of vector div/mod.
            shift = d_model.bit_length() - 1
            j = lane & (d_model - 1)
            pos = (row * positions_per_row).astype(jnp.float32) \
                + (lane >> shift).astype(jnp.float32)
        # inv_freq / phase depend only on the feature index -> W exps, not TR*W.
        two_k = ((j >> 1) << 1).astype(jnp.float32)                     # 2 * floor(j/2)
        inv_freq = jnp.exp(two_k * (-math.log(10000.0) / d_model))      # (1, W)
        phase = (j & 1).astype(jnp.float32) * (math.pi / 2.0)           # (1, W)
        # Even features: sin(angle); odd features: cos(angle) == sin(angle + pi/2).
        pe_ref[...] = jnp.sin(pos * inv_freq + phase)

    y = x_ref[0].astype(jnp.float32) + pe_ref[...]

    if apply_dropout and dropout_p > 0.0:
        # Inverted dropout, training semantics: keep w.p. (1-p), scale 1/(1-p).
        # Counter-based hash RNG (lowbias32-style) over a globally unique
        # (batch, row, lane) counter mixed with the seed -- pure VPU integer ops.
        row = rt * TR + lax.broadcasted_iota(jnp.int32, (TR, W), 0)
        lane = lax.broadcasted_iota(jnp.int32, (TR, W), 1)
        total_rows = pl.num_programs(0) * TR
        gid = (b * total_rows + row) * W + lane
        u = gid.astype(jnp.uint32) + seed_ref[0].astype(jnp.uint32) * jnp.uint32(0x9E3779B9)
        u = u ^ (u >> 16)
        u = u * jnp.uint32(0x7FEB352D)
        u = u ^ (u >> 15)
        u = u * jnp.uint32(0x846CA68B)
        u = u ^ (u >> 16)
        threshold = jnp.uint32(min(int(dropout_p * (2.0 ** 32)), 2 ** 32 - 1))
        keep = u >= threshold
        y = jnp.where(keep, y * (1.0 / (1.0 - dropout_p)), jnp.zeros_like(y))

    o_ref[0] = y.astype(o_ref.dtype)


def positional_encoding(x, *, dropout_p=0.1, seed=0, train=True):
    """x: (B, S, D).  Returns dropout(x + pe[:, :S]) with PyTorch PE semantics."""
    B, S, D = x.shape
    itemsize = jnp.dtype(x.dtype).itemsize

    # Lane-dense presentation of the (S, D) slab:
    #  - D % 128 == 0: already lane-dense, rows are sequence positions.
    #  - small power-of-two D dividing 128: pack 128//D positions per 128-lane row.
    #  - otherwise: keep lane dim == D (correct; stores are partially masked).
    if D % _LANES != 0 and D < _LANES and _LANES % D == 0 and S % (_LANES // D) == 0:
        q = _LANES // D
        n_rows, width = S // q, _LANES
        x2 = x.reshape(B, n_rows, width)
    else:
        q = 1
        n_rows, width = S, D
        x2 = x

    # Tile the sequence(-row) axis so pipelined VMEM use stays ~10 MiB total
    # (safe on v7x's 64 MiB VMEM) while blocks stay large enough (~2 MiB) to
    # sit at the HBM roofline on all generations.
    tile_rows = _pick_tile_rows(n_rows, max(1, _TILE_BYTES // (width * itemsize)))
    grid = (n_rows // tile_rows, B)

    kernel = partial(
        _pe_dropout_kernel,
        d_model=D,
        rows_per_tile=tile_rows,
        row_width=width,
        positions_per_row=q,
        dropout_p=float(dropout_p),
        apply_dropout=bool(train),
    )

    seed_arr = jnp.asarray([seed], dtype=jnp.int32)

    grid_spec = pltpu.PrefetchScalarGridSpec(
        num_scalar_prefetch=1,
        grid=grid,
        in_specs=[pl.BlockSpec((1, tile_rows, width), lambda rt, b, seed_ref: (b, rt, 0))],
        out_specs=pl.BlockSpec((1, tile_rows, width), lambda rt, b, seed_ref: (b, rt, 0)),
        scratch_shapes=[pltpu.VMEM((tile_rows, width), jnp.float32)],
    )

    out = pl.pallas_call(
        kernel,
        out_shape=jax.ShapeDtypeStruct((B, n_rows, width), x.dtype),
        grid_spec=grid_spec,
        compiler_params=pltpu.CompilerParams(
            # Sequence tiles may split across TensorCores; the batch axis must
            # stay sequential so the PE scratch written at b == 0 is reused.
            dimension_semantics=("parallel", "arbitrary"),
            vmem_limit_bytes=32 * 1024 * 1024,
        ),
    )(seed_arr, x2)

    return out.reshape(B, S, D)


def _reference_pe_add(x):
    """Pure-JAX reference for the deterministic (eval / p=0) path: x + pe[:, :S]."""
    B, S, D = x.shape
    position = jnp.arange(0.0, S, dtype=jnp.float32)[:, None]
    div_term = jnp.exp(
        jnp.arange(0.0, D, 2, dtype=jnp.float32) * -(math.log(10000.0) / D)
    )
    pe = jnp.zeros((S, D), dtype=jnp.float32)
    pe = pe.at[:, 0::2].set(jnp.sin(position * div_term))
    pe = pe.at[:, 1::2].set(jnp.cos(position * div_term))
    return x + pe[None, :, :]


if __name__ == "__main__":
    key = jax.random.PRNGKey(0)
    B, S, D = 2, 8, 32
    x = jax.random.normal(key, (B, S, D), dtype=jnp.float32)

    # Deterministic path (dropout disabled) -- check against pure-JAX reference.
    y_eval = jax.block_until_ready(positional_encoding(x, dropout_p=0.1, seed=0, train=False))
    y_ref = _reference_pe_add(x)
    assert jnp.allclose(y_eval, y_ref, atol=1e-5, rtol=1e-5), "eval-path mismatch vs reference"

    # Training path (dropout p=0.1): every element must be either dropped to 0
    # or equal to (x + pe) / (1 - p).
    p = 0.1
    y_train = jax.block_until_ready(positional_encoding(x, dropout_p=p, seed=1234, train=True))
    assert y_train.shape == x.shape
    expected = y_ref / (1.0 - p)
    ok = jnp.isclose(y_train, expected, atol=1e-4, rtol=1e-5) | (y_train == 0.0)
    assert bool(jnp.all(ok)), "train-path values are neither dropped nor scaled (x+pe)"

    # Also exercise the native (D % 128 == 0) lane-dense layout path.
    x2 = jax.random.normal(jax.random.PRNGKey(1), (2, 8, 128), dtype=jnp.float32)
    y2 = jax.block_until_ready(positional_encoding(x2, dropout_p=0.1, seed=0, train=False))
    assert jnp.allclose(y2, _reference_pe_add(x2), atol=1e-5, rtol=1e-5), "D=128 path mismatch"

    print("KERNEL_OK")
</pallas_src>

<mosaic_0001>
module attributes {stable_mosaic.version = 11 : i64} {
  func.func @_pe_dropout_kernel(%arg0: i32, %arg1: i32, %arg2: memref<1xi32, #tpu.memory_space<smem>>, %arg3: memref<1x2x128xf32, #tpu.memory_space<vmem>>, %arg4: memref<1x2x128xf32, #tpu.memory_space<vmem>>, %arg5: memref<2x128xf32, #tpu.memory_space<vmem>>) attributes {dimension_semantics = [#tpu.dimension_semantics<parallel>, #tpu.dimension_semantics<arbitrary>], iteration_bounds = array<i64: 1, 2>, scalar_prefetch = 1 : i64, scratch_operands = 1 : i64, tpu.core_type = #tpu.core_type<tc>, window_params = [{transform_indices = @transform_0, window_bounds = array<i64: 1, 2, 128>}, {transform_indices = @transform_1, window_bounds = array<i64: 1, 2, 128>}]} {
    %c0_i32 = arith.constant 0 : i32
    %0 = arith.cmpi eq, %arg1, %c0_i32 : i32
    %1 = arith.extui %0 : i1 to i32
    %c0_i32_0 = arith.constant 0 : i32
    %2 = arith.cmpi ne, %1, %c0_i32_0 : i32
    scf.if %2 {
      %c2_i32 = arith.constant 2 : i32
      %10 = arith.muli %arg0, %c2_i32 : i32
      %11 = tpu.iota {dimensions = array<i32: 0>} : vector<2x1xi32>
      %12 = vector.broadcast %10 : i32 to vector<2x1xi32>
      %13 = arith.addi %12, %11 : vector<2x1xi32>
      %14 = tpu.iota {dimensions = array<i32: 1>} : vector<1x128xi32>
      %c31_i32 = arith.constant 31 : i32
      %15 = vector.broadcast %c31_i32 : i32 to vector<1x128xi32>
      %16 = arith.andi %14, %15 : vector<1x128xi32>
      %c4_i32 = arith.constant 4 : i32
      %17 = vector.broadcast %c4_i32 : i32 to vector<2x1xi32>
      %18 = arith.muli %13, %17 : vector<2x1xi32>
      %19 = arith.sitofp %18 : vector<2x1xi32> to vector<2x1xf32>
      %c5_i32 = arith.constant 5 : i32
      %20 = vector.broadcast %c5_i32 : i32 to vector<1x128xi32>
      %21 = arith.shrsi %14, %20 : vector<1x128xi32>
      %22 = arith.sitofp %21 : vector<1x128xi32> to vector<1x128xf32>
      %23 = vector.broadcast %19 : vector<2x1xf32> to vector<2x128xf32>
      %24 = vector.broadcast %22 : vector<1x128xf32> to vector<2x128xf32>
      %25 = arith.addf %23, %24 : vector<2x128xf32>
      %c1_i32 = arith.constant 1 : i32
      %26 = vector.broadcast %c1_i32 : i32 to vector<1x128xi32>
      %27 = arith.shrsi %16, %26 : vector<1x128xi32>
      %c1_i32_8 = arith.constant 1 : i32
      %28 = vector.broadcast %c1_i32_8 : i32 to vector<1x128xi32>
      %29 = arith.shli %27, %28 : vector<1x128xi32>
      %30 = arith.sitofp %29 : vector<1x128xi32> to vector<1x128xf32>
      %cst = arith.constant -0.287823141 : f32
      %31 = vector.broadcast %cst : f32 to vector<1x128xf32>
      %32 = arith.mulf %30, %31 : vector<1x128xf32>
      %33 = math.exp %32 : vector<1x128xf32>
      %c1_i32_9 = arith.constant 1 : i32
      %34 = vector.broadcast %c1_i32_9 : i32 to vector<1x128xi32>
      %35 = arith.andi %16, %34 : vector<1x128xi32>
      %36 = arith.sitofp %35 : vector<1x128xi32> to vector<1x128xf32>
      %cst_10 = arith.constant 1.57079637 : f32
      %37 = vector.broadcast %cst_10 : f32 to vector<1x128xf32>
      %38 = arith.mulf %36, %37 : vector<1x128xf32>
      %39 = vector.broadcast %33 : vector<1x128xf32> to vector<2x128xf32>
      %40 = arith.mulf %25, %39 : vector<2x128xf32>
      %41 = vector.broadcast %38 : vector<1x128xf32> to vector<2x128xf32>
      %42 = arith.addf %40, %41 : vector<2x128xf32>
      %43 = math.sin %42 : vector<2x128xf32>
      %c0_11 = arith.constant 0 : index
      %c0_12 = arith.constant 0 : index
      %44 = vector.load %arg5[%c0_11, %c0_12] : memref<2x128xf32, #tpu.memory_space<vmem>>, vector<2x128xf32>
      tpu.vector_store %arg5[%c0_11, %c0_12], %43 {strides = array<i32>} : memref<2x128xf32, #tpu.memory_space<vmem>>, vector<2x128xf32>,
    } else {
    }
    %c0 = arith.constant 0 : index
    %c0_1 = arith.constant 0 : index
    %c0_2 = arith.constant 0 : index
    %3 = vector.load %arg3[%c0, %c0_1, %c0_2] : memref<1x2x128xf32, #tpu.memory_space<vmem>>, vector<1x2x128xf32>
    %4 = vector.shape_cast %3 : vector<1x2x128xf32> to vector<2x128xf32>
    %c0_3 = arith.constant 0 : index
    %c0_4 = arith.constant 0 : index
    %5 = vector.load %arg5[%c0_3, %c0_4] : memref<2x128xf32, #tpu.memory_space<vmem>>, vector<2x128xf32>
    %6 = arith.addf %4, %5 : vector<2x128xf32>
    %c0_5 = arith.constant 0 : index
    %c0_6 = arith.constant 0 : index
    %c0_7 = arith.constant 0 : index
    %7 = vector.load %arg4[%c0_5, %c0_6, %c0_7] : memref<1x2x128xf32, #tpu.memory_space<vmem>>, vector<1x2x128xf32>
    %8 = vector.shape_cast %7 : vector<1x2x128xf32> to vector<2x128xf32>
    %9 = vector.shape_cast %6 : vector<2x128xf32> to vector<1x2x128xf32>
    tpu.vector_store %arg4[%c0_5, %c0_6, %c0_7], %9 {strides = array<i32>} : memref<1x2x128xf32, #tpu.memory_space<vmem>>, vector<1x2x128xf32>,
    return
  }
  func.func @transform_0(%arg0: i32, %arg1: i32, %arg2: memref<1xi32, #tpu.memory_space<smem>>) -> (i32, i32, i32) {
    %c0_i32 = arith.constant 0 : i32
    %c0_i32_0 = arith.constant 0 : i32
    return %arg1, %arg0, %c0_i32 : i32, i32, i32
  }
  func.func @transform_1(%arg0: i32, %arg1: i32, %arg2: memref<1xi32, #tpu.memory_space<smem>>) -> (i32, i32, i32) {
    %c0_i32 = arith.constant 0 : i32
    %c0_i32_0 = arith.constant 0 : i32
    return %arg1, %arg0, %c0_i32 : i32, i32, i32
  }
}

</mosaic_0001>

<llo_original>
// kernel: tpu_custom_call.1
$region0: #{tpu_custom_call.1}
  #allocation0 [shape = 'u32[]', space=smem, size = 0x4, offset = 0x4, fixed_abs, tag = 'smem constant byte address 0x4 - core index']
  #allocation1 [shape = 'u32[72,128]{1,0:T(1,128)}', space=vmem, size = 0x9000, scoped, tag = 'internal scratch']
  #allocation2 [shape = 'f32[2,128]{1,0:T(2,128)}', space=vmem, size = 0x400, scoped, tag = 'scratch operand']
  #allocation3 [shape = 's32[1]{0}', space=sflag, size = 0x4, scoped, tag = 'scoped memory for tpu_custom_call.1']
  #allocation4 [shape = 's32[1]{0:T(128)S(6)}', space=smem, size = 0x200, scoped, tag = 'prefetched SMEM operand 0']
  %s0 = inlined_call_operand.<no memory space> [shape: s32[1], index: 0, kind: input, shape index: {}]
  %s1 = inlined_call_operand.hbm [shape: f32[2,2,128], index: 1, kind: input, shape index: {}]
  %s2 = inlined_call_operand.hbm [shape: f32[2,2,128], index: 2, kind: output, shape index: {}]
  %s3 = sld [smem:[#allocation0]]
  $region45: #{tpu_custom_call.1} parent=0
    _
  %s5 = ssub.s32 1, %s3
  %s6 = scalar_select 0, %s5, %s3
  %7 = sst [smem:[#allocation4]] %s0
  $region1: #{tpu_custom_call.1} parent=0
    #allocation5 [shape = 'u8[2048]{0}', space=vmem, size = 0x800, scoped, tag = 'input window, operand 1']
    #allocation6 [shape = 's32[2]{0}', space=sflag, size = 0x8, scoped, tag = 'scoped memory for tpu_custom_call.1']
    #allocation7 [shape = 's32[2]{0}', space=sflag, size = 0x8, scoped, tag = 'scoped memory for tpu_custom_call.1']
    #allocation8 [shape = 'u8[2048]{0}', space=vmem, size = 0x800, scoped, tag = 'output window, operand 0']
    %8 = vsyncpa [#allocation6], 0
    %s9 = scalar_lea.sflag [#allocation6], 1
    %10 = vsyncpa %s9, 0
    %11 = vsyncpa [#allocation7], 0
    %s12 = scalar_lea.sflag [#allocation7], 1
    %13 = vsyncpa %s12, 0
    loop: start=0, step=1, limit=4
    $region2: #{tpu_custom_call.1} parent=1 // loop_pre_header
      _
    $region3: #{tpu_custom_call.1} parent=1 // loop_header
      %s15 = sphi 0, %s19
      %p16 = scmp.ge.s32.totalorder %s15, 4
      %s22 = sphi 0, %s34
      %s23 = sphi 0, %s30
      %s24 = sphi 0, %s22
      %s25 = sphi 0, %s23
      %s26 = sphi 0, %s24
      %s27 = sphi 0, %s25
      %s39 = sphi 0, %s41
      %s42 = sphi 0, %s39
      %s43 = sphi 0, %s42
      %s59 = sphi 0, %s43
      %s67 = sphi 0, %s69
      %s70 = sphi 0, %s67
      %s71 = sphi 0, %s70
      %s87 = sphi 0, %s71
    $region4: #{tpu_custom_call.1} parent=1 // loop_header_branch
      %18 = sbr.rel (%p16) target = $region8
    $region5: #{tpu_custom_call.1} parent=1 // loop_body
      %s20 = ssub.s32 %s15, 1
      %s21 = ssub.s32 %s15, 2
      %s28 = sadd.s32 1, %s23
      %p29 = scmp.ge.s32.totalorder %s28, 2
      %s30 = scalar_select %p29, 0, %s28
      %s31 = sadd.s32 1, %s22
      %s32 = scalar_select %p29, %s31, %s22
      %p33 = scmp.ge.s32.totalorder %s32, 1
      %s34 = scalar_select %p33, 0, %s32
      %s35 = ssub.s32 %s23, %s30
      %s36 = ssub.s32 %s22, %s34
      %s37 = sor.u32 %s35, %s36
      %p38 = scmp.eq.s32.totalorder %s37, 0
      %s40 = sadd.s32 %s39, 1
      %s41 = scalar_select %p38, %s39, %s40
      %p44 = pneg %p38
      %p45 = scmp.eq.s32.totalorder %s15, 1
      %p46 = por %p44, %p45
      %p47 = scmp.ne.s32.totalorder %s39, %s42
      %p48 = scmp.eq.s32.totalorder %s15, 0
      %p49 = por %p47, %p48
      %p50 = scmp.ne.s32.totalorder %s39, %s42
      %p51 = scmp.eq.s32.totalorder %s20, 1
      %p52 = por %p50, %p51
      %p53 = scmp.ne.s32.totalorder %s42, %s43
      %p54 = scmp.eq.s32.totalorder %s20, 0
      %p55 = por %p53, %p54
      %p56 = scmp.ne.s32.totalorder %s42, %s43
      %p57 = scmp.eq.s32.totalorder %s21, 1
      %p58 = por %p56, %p57
      %p60 = scmp.ne.s32.totalorder %s43, %s59
      %p61 = scmp.eq.s32.totalorder %s21, 0
      %p62 = por %p60, %p61
      %s63 = ssub.s32 %s23, %s30
      %s64 = ssub.s32 %s22, %s34
      %s65 = sor.u32 %s63, %s64
      %p66 = scmp.eq.s32.totalorder %s65, 0
      %s68 = sadd.s32 %s67, 1
      %s69 = scalar_select %p66, %s67, %s68
      %p72 = pneg %p66
      %p73 = scmp.eq.s32.totalorder %s15, 1
      %p74 = por %p72, %p73
      %p75 = scmp.ne.s32.totalorder %s67, %s70
      %p76 = scmp.eq.s32.totalorder %s15, 0
      %p77 = por %p75, %p76
      %p78 = scmp.ne.s32.totalorder %s67, %s70
      %p79 = scmp.eq.s32.totalorder %s20, 1
      %p80 = por %p78, %p79
      %p81 = scmp.ne.s32.totalorder %s70, %s71
      %p82 = scmp.eq.s32.totalorder %s20, 0
      %p83 = por %p81, %p82
      %p84 = scmp.ne.s32.totalorder %s70, %s71
      %p85 = scmp.eq.s32.totalorder %s21, 1
      %p86 = por %p84, %p85
      %p88 = scmp.ne.s32.totalorder %s71, %s87
      %p89 = scmp.eq.s32.totalorder %s21, 0
      %p90 = por %p88, %p89
      %p91 = scmp.le.s32.totalorder 1, %s15
      %p92 = scmp.lt.s32.totalorder %s15, 3
      %p93 = pnand %p91, %p92
      %p94 = pneg %p93
      // Predicated region
      $region9: #{tpu_custom_call.1} parent=5 // pred_check
        _
      $region10: #{tpu_custom_call.1} parent=5 // pred_check_branch
        %96 = sbr.rel (%p93) target = $region12
      $region11: #{tpu_custom_call.1} parent=5 // pred_region
        %s97 = ssub.s32 %s15, 1
      $region12: #{tpu_custom_call.1} parent=5 // pred_fallthru
        _
      %p98 = scmp.lt.s32.totalorder %s15, 2
      // Predicated region
      $region13: #{tpu_custom_call.1} parent=5 // pred_check
        %p99 = pneg %p98
      $region14: #{tpu_custom_call.1} parent=5 // pred_check_branch
        %101 = sbr.rel (%p99) target = $region16
      $region15: #{tpu_custom_call.1} parent=5 // pred_region
        // Predicated region
        $region17: #{tpu_custom_call.1} parent=15 // pred_check
          %p102 = pneg %p49
        $region18: #{tpu_custom_call.1} parent=15 // pred_check_branch
          %104 = sbr.rel (%p102) target = $region20
        $region19: #{tpu_custom_call.1} parent=15 // pred_region
          %s105 = sand.u32 %s39, 1
          %s106 = scalar_lea.sflag [#allocation6], %s105
          %s107 = sand.u32 %s39, 1
          %s108 = smul.addr %s107, 2
          %s109 = scalar_lea.vmem [#allocation5], %s108
          %111 = vsyncadd %s106, 0
          %s112 = sadd.s32 %s22, %s23
          %s113 = smul.addr %s112, 2
          %s114 = scalar_lea.hbm %s1, %s113
          %s116 = sshll.u32 %s114, 4
          %s117 = int_to_ptr.hbm [resolvable:$true] %s116
          %s118 = sshll.u32 %s109, 4
          %s119 = int_to_ptr.vmem [resolvable:$true] %s118
          %121 = dma.hbm_to_vmem [thread:$0]  %s117, 32, %s119, %s106
        $region20: #{tpu_custom_call.1} parent=15 // pred_fallthru
          _
      $region16: #{tpu_custom_call.1} parent=5 // pred_fallthru
        _
      %p122 = scmp.le.s32.totalorder 1, %s15
      %p123 = scmp.lt.s32.totalorder %s15, 3
      %p124 = pnand %p122, %p123
      %p125 = pneg %p124
      // Predicated region
      $region21: #{tpu_custom_call.1} parent=5 // pred_check
        _
      $region22: #{tpu_custom_call.1} parent=5 // pred_check_branch
        %127 = sbr.rel (%p124) target = $region24
      $region23: #{tpu_custom_call.1} parent=5 // pred_region
        %s128 = ssub.s32 %s15, 1
        %s129 = sand.u32 %s42, 1
        %s130 = scalar_lea.sflag [#allocation6], %s129
        %s131 = sand.u32 %s42, 1
        %s132 = smul.addr %s131, 2
        %s133 = scalar_lea.vmem [#allocation5], %s132
        // Predicated region
        $region25: #{tpu_custom_call.1} parent=23 // pred_check
          %p134 = pneg %p55
        $region26: #{tpu_custom_call.1} parent=23 // pred_check_branch
          %136 = sbr.rel (%p134) target = $region28
        $region27: #{tpu_custom_call.1} parent=23 // pred_region
          %138 = dma.done %s130, 32
        $region28: #{tpu_custom_call.1} parent=23 // pred_fallthru
          _
        %s139 = sand.u32 %s42, 1
        %s140 = scalar_lea.sflag [#allocation6], %s139
        %s141 = sand.u32 %s42, 1
        %s142 = smul.addr %s141, 2
        %s143 = scalar_lea.vmem [#allocation5], %s142
        %p144 = pneg %p55
        %p145 = pneg %p52
        %p146 = pneg %p83
        %p147 = pneg %p80
        %s148 = sand.u32 %s70, 1
        %s149 = scalar_lea.sflag [#allocation7], %s148
        %s150 = sand.u32 %s70, 1
        %s151 = smul.addr %s150, 2
        %s152 = scalar_lea.vmem [#allocation8], %s151
        %p153 = scmp.eq.s32.totalorder %s25, 0
        // Predicated region
        $region29: #{tpu_custom_call.1} parent=23 // pred_check
          %p154 = pneg %p153
        $region30: #{tpu_custom_call.1} parent=23 // pred_check_branch
          %156 = sbr.rel (%p154) target = $region32
        $region31: #{tpu_custom_call.1} parent=23 // pred_region
          %s157 = smul.u32 %s24, 2
          %v158 = vlaneseq
          %v159 = vshrl.u32 %v158, 7
          %v160 = vstv %s157
          %v161 = vadd.s32 %v160, %v159
          %v162 = vlaneseq
          %v163 = vand.u32 %v162, 127
          %v164 = vand.u32 %v163, 31
          %v165 = vmul.u32 %v161, 4
          %v166 = vcvt.s32.f32 %v165
          %v167 = vshra.s32 %v163, 5
          %v168 = vcvt.s32.f32 %v167
          %v169 = vadd.f32 %v166, %v168
          %v170 = vshra.s32 %v164, 1
          %v171 = vshll.u32 %v170, 1
          %v172 = vcvt.s32.f32 %v171
          %v173 = vmul.f32 %v172, -0.28782314
          %v174 = vmul.f32 %v173, 1.442695
          %v175 = vpow.pop %v174
          %v176 = vand.u32 %v164, 1
          %v177 = vcvt.s32.f32 %v176
          %v178 = vmul.f32 %v177, 1.5707964
          %v179 = vmul.f32 %v169, %v175
          %v180 = vadd.f32 %v179, %v178
          %v181 = vand.u32 2147483647, %v180
          %vm182 = vcmp.le.f32.partialorder %v181, 0.7853982
          %vm183 = vcmp.lt.s32.totalorder %v180, 0
          %v184 = vand.u32 %v180, 2139095040
          %v185 = vshrl.u32 %v184, 23
          %v186 = vsub.s32 %v185, 127
          %v187 = vand.u32 2147483647, %v180
          %v188 = vand.u32 %v187, 8388607
          %v189 = vor.u32 %v188, 8388608
          %v190 = vsub.s32 0, %v189
          %v191 = vadd.s32 %v186, 1
          %vm192 = vcmp.gt.s32.totalorder %v191, 0
          %v193 = vsel %vm192, %v191, 0
          %v194 = vshrl.u32 %v193, 5
          %v195 = vand.u32 %v193, 31
          %v196 = vsub.s32 32, %v195
          %v197 = vshrl.u32 683565275, %v196
          %v198 = vshll.u32 683565275, %v195
          %v199 = vshrl.u32 2475754826, %v196
          %v200 = vor.u32 %v198, %v199
          %v201 = vshll.u32 2475754826, %v195
          %v202 = vshrl.u32 2131351028, %v196
          %v203 = vor.u32 %v201, %v202
          %v204 = vshll.u32 2131351028, %v195
          %v205 = vshrl.u32 2102212464, %v196
          %v206 = vor.u32 %v204, %v205
          %v207 = vshll.u32 2102212464, %v195
          %v208 = vshrl.u32 920167782, %v196
          %v209 = vor.u32 %v207, %v208
          %v210 = vshll.u32 920167782, %v195
          %v211 = vshrl.u32 1326507024, %v196
          %v212 = vor.u32 %v210, %v211
          %vm213 = vcmp.lt.s32.totalorder %v194, 1
          %vm214 = vcmp.lt.s32.totalorder %v194, 2
          %vm215 = vcmp.lt.s32.totalorder %v194, 3
          %vm216 = vcmp.lt.s32.totalorder %v194, 4
          %v217 = vsel %vm213, %v197, %v200
          %v218 = vsel %vm216, %v206, 2102212464
          %v219 = vsel %vm215, %v203, %v218
          %v220 = vsel %vm214, %v217, %v219
          %v221 = vsel %vm213, %v200, %v203
          %v222 = vsel %vm216, %v209, 920167782
          %v223 = vsel %vm215, %v206, %v222
          %v224 = vsel %vm214, %v221, %v223
          %v225 = vsel %vm213, %v203, %v206
          %v226 = vsel %vm216, %v212, 1326507024
          %v227 = vsel %vm215, %v209, %v226
          %v228 = vsel %vm214, %v225, %v227
          %v229 = vshll.u32 %v189, 8
          %v230 = vand.u32 %v229, 65535
          %v231 = vshrl.u32 %v229, 16
          %v232 = vand.u32 %v228, 65535
          %v233 = vshrl.u32 %v228, 16
          %v234 = vmul.u32 %v230, %v232
          %v235 = vmul.u32 %v230, %v233
          %v236 = vmul.u32 %v231, %v232
          %v237 = vmul.u32 %v231, %v233
          %v238 = vshll.u32 %v235, 16
          %v239 = vshrl.u32 %v235, 16
          %v240 = vshll.u32 %v236, 16
          %v241 = vshrl.u32 %v236, 16
          %vm242 = vc.u32 %v234, %v238
          %v243 = vsel %vm242, 1, 0
          %v244 = vadd.s32 %v234, %v238
          %v245 = vadd.s32 %v237, %v243
          %vm246 = vc.u32 %v244, %v240
          %v247 = vsel %vm246, 1, 0
          %v248 = vadd.s32 %v244, %v240
          %v249 = vadd.s32 %v245, %v247
          %v250 = vadd.s32 %v249, %v239
          %v251 = vadd.s32 %v250, %v241
          %v252 = vand.u32 %v229, 65535
          %v253 = vshrl.u32 %v229, 16
          %v254 = vand.u32 %v224, 65535
          %v255 = vshrl.u32 %v224, 16
          %v256 = vmul.u32 %v252, %v254
          %v257 = vmul.u32 %v252, %v255
          %v258 = vmul.u32 %v253, %v254
          %v259 = vmul.u32 %v253, %v255
          %v260 = vshll.u32 %v257, 16
          %v261 = vshrl.u32 %v257, 16
          %v262 = vshll.u32 %v258, 16
          %v263 = vshrl.u32 %v258, 16
          %vm264 = vc.u32 %v256, %v260
          %v265 = vsel %vm264, 1, 0
          %v266 = vadd.s32 %v256, %v260
          %v267 = vadd.s32 %v259, %v265
          %vm268 = vc.u32 %v266, %v262
          %v269 = vsel %vm268, 1, 0
          %v270 = vadd.s32 %v266, %v262
          %v271 = vadd.s32 %v267, %v269
          %v272 = vadd.s32 %v271, %v261
          %v273 = vadd.s32 %v272, %v263
          %v274 = vmul.u32 %v229, %v220
          %v275 = vadd.s32 %v251, %v270
          %vm276 = vc.u32 %v251, %v270
          %v277 = vadd.s32 %v273, 1
          %v278 = vsel %vm276, %v277, %v273
          %v279 = vadd.s32 %v274, %v278
          %v280 = vadd.s32 %v279, 536870912
          %v281 = vshrl.u32 %v280, 30
          %v282 = vshll.u32 %v281, 30
          %v283 = vsub.s32 %v279, %v282
          %vm284 = vcmp.lt.s32.totalorder %v283, 0
          %v285 = vsub.s32 0, %v283
          %v286 = vsel %vm284, %v285, %v283
          %v287 = vclz %v286
          %v288 = vsub.s32 %v287, 2
          %vm289 = vcmp.gt.s32.totalorder 0, %v288
          %v290 = vsel %vm289, 0, %v288
          %v291 = vsub.s32 32, %v290
          %v292 = vshll.u32 %v283, %v290
          %v293 = vshrl.u32 %v275, %v291
          %v294 = vor.u32 %v292, %v293
          %v295 = vsub.s32 4294967266, %v290
          %v296 = vadd.s32 %v295, 127
          %v297 = vshll.u32 %v296, 23
          %v298 = vor.u32 4788187, %v297
          %v299 = vand.u32 2147483647, %v298
          %v301 = vcvt.s32.f32 %v294
          %v302 = vmul.f32 %v301, %v299
          %v303 = vxor.u32 %v302, 2147483648
          %v304 = vsel %vm183, %v303, %v302
          %v305 = vsub.s32 4, %v281
          %v306 = vsel %vm183, %v305, %v281
          %v307 = vsel %vm182, %v180, %v304
          %v308 = vsel %vm182, 0, %v306
          %v309 = vmul.f32 %v307, %v307
          %v310 = vmul.f32 %v309, -0.001358992
          %v311 = vadd.f32 %v310, 0.041655596
          %v312 = vmul.f32 %v309, %v311
          %v313 = vadd.f32 %v312, -0.4999988
          %v314 = vmul.f32 %v309, %v313
          %v315 = vadd.f32 1.0, %v314
          %v316 = vmul.f32 %v307, %v307
          %v317 = vmul.f32 %v316, -0.00019511016
          %v318 = vadd.f32 %v317, 0.008332121
          %v319 = vmul.f32 %v316, %v318
          %v320 = vadd.f32 %v319, -0.16666654
          %v321 = vmul.f32 %v316, %v320
          %v322 = vadd.f32 %v321, 1.0
          %v323 = vmul.f32 %v322, %v307
          %vm324 = vweird.f32 %v180
          %v325 = vadd.s32 %v308, 3
          %v326 = vand.u32 %v325, 3
          %vm327 = vcmp.lt.s32.totalorder %v326, 2
          %vm328 = vcmp.eq.s32.totalorder %v326, 0
          %v329 = vxor.u32 %v323, 2147483648
          %v330 = vsel %vm328, %v315, %v329
          %vm331 = vcmp.eq.s32.totalorder %v326, 2
          %v332 = vxor.u32 %v315, 2147483648
          %v333 = vsel %vm331, %v332, %v323
          %v334 = vsel %vm327, %v330, %v333
          %v335 = vsel %vm324, nan, %v334
          %336 = vst [vmem:[#allocation2] sm:$0x3] %v335
        $region32: #{tpu_custom_call.1} parent=23 // pred_fallthru
          _
        %v337 = vld [vmem:[%s133] sm:$0x3]
        %v338 = vld [vmem:[#allocation2] sm:$0x3]
        %v339 = vadd.f32 %v337, %v338
        %340 = vst [vmem:[%s152] sm:$0x3] %v339
        %s341 = sand.u32 %s70, 1
        %s342 = scalar_lea.sflag [#allocation7], %s341
        %s343 = sand.u32 %s70, 1
        %s344 = smul.addr %s343, 2
        %s345 = scalar_lea.vmem [#allocation8], %s344
        // Predicated region
        $region33: #{tpu_custom_call.1} parent=23 // pred_check
          %p346 = pneg %p80
        $region34: #{tpu_custom_call.1} parent=23 // pred_check_branch
          %348 = sbr.rel (%p346) target = $region36
        $region35: #{tpu_custom_call.1} parent=23 // pred_region
          %350 = vsyncadd %s342, 0
          %s351 = sadd.s32 %s24, %s25
          %s352 = smul.addr %s351, 2
          %s353 = scalar_lea.hbm %s2, %s352
          %s355 = sshll.u32 %s345, 4
          %s356 = int_to_ptr.vmem [resolvable:$true] %s355
          %s357 = sshll.u32 %s353, 4
          %s358 = int_to_ptr.hbm [resolvable:$true] %s357
          %360 = dma.vmem_to_hbm [thread:$0]  %s356, 32, %s358, %s342
        $region36: #{tpu_custom_call.1} parent=23 // pred_fallthru
          _
      $region24: #{tpu_custom_call.1} parent=5 // pred_fallthru
        _
      %p361 = scmp.le.s32.totalorder 2, %s15
      // Predicated region
      $region37: #{tpu_custom_call.1} parent=5 // pred_check
        %p362 = pneg %p361
      $region38: #{tpu_custom_call.1} parent=5 // pred_check_branch
        %364 = sbr.rel (%p362) target = $region40
      $region39: #{tpu_custom_call.1} parent=5 // pred_region
        %s365 = ssub.s32 %s15, 2
        // Predicated region
        $region41: #{tpu_custom_call.1} parent=39 // pred_check
          %p366 = pneg %p86
        $region42: #{tpu_custom_call.1} parent=39 // pred_check_branch
          %368 = sbr.rel (%p366) target = $region44
        $region43: #{tpu_custom_call.1} parent=39 // pred_region
          %s369 = sand.u32 %s71, 1
          %s370 = scalar_lea.sflag [#allocation7], %s369
          %s371 = sand.u32 %s71, 1
          %s372 = smul.addr %s371, 2
          %s373 = scalar_lea.vmem [#allocation8], %s372
          %375 = dma.done %s370, 32
        $region44: #{tpu_custom_call.1} parent=39 // pred_fallthru
          _
      $region40: #{tpu_custom_call.1} parent=5 // pred_fallthru
        _
    $region6: #{tpu_custom_call.1} parent=1 // loop_footer
      %s19 = sadd.s32 1, %s15
    $region7: #{tpu_custom_call.1} parent=1 // loop_footer_branch
      %14 = sbr.rel target = $region3
    $region8: #{tpu_custom_call.1} parent=1 // loop_exit
      _
    %376 = vsyncpa [#allocation6], 1
    %s377 = scalar_lea.sflag [#allocation6], 1
    %378 = vsyncpa %s377, 1
    %379 = vsyncpa [#allocation7], 1
    %s380 = scalar_lea.sflag [#allocation7], 1
    %381 = vsyncpa %s380, 1

</llo_original>
